<compile_context>
chip_gen: v6e
topology: v6e:2x2x1
jax: 0.10.0
libtpu: 0.0.40
codegen_flags: <defaults>
</compile_context>

<pallas_src>
import functools
import math

import jax
import jax.numpy as jnp
from jax.experimental import pallas as pl
from jax.experimental.pallas import tpu as pltpu

LN_EPS = 1e-12                    # LongformerConfig.layer_norm_eps default
NEG_INF = -1e30
VMEM_LIMIT = 64 * 1024 * 1024     # explicit scoped-VMEM cap (fits all chips)


def _layer_norm(x, gamma, beta):
    mu = jnp.mean(x, axis=-1, keepdims=True)
    var = jnp.mean(jnp.square(x - mu), axis=-1, keepdims=True)
    return (x - mu) * jax.lax.rsqrt(var + LN_EPS) * gamma + beta


# ------------------------------- kernels ------------------------------------


def embed_kernel(x_ref, pos_ref, tok_ref, g_ref, b_ref, out_ref):
    x = x_ref[0] + pos_ref[...] + tok_ref[...]
    out_ref[0] = _layer_norm(x, g_ref[...], b_ref[...])


def qkv_kernel(x_ref, w_ref, b_ref, out_ref):
    # Fused Q|K|V projection: one MXU pass with N = 3D, bf16 operands,
    # f32 accumulation.  Q scale is already folded into w/b host-side.
    x = x_ref[0].astype(jnp.bfloat16)                               # (TQ, D)
    acc = jnp.dot(x, w_ref[...], preferred_element_type=jnp.float32)
    out_ref[0] = (acc + b_ref[...]).astype(out_ref.dtype)           # (TQ, 3D)


def attn_kernel(tq, tk, half_w, n_kv, t_actual,
                q_ref, k_ref, v_ref, o_ref, m_sc, l_sc, acc_sc):
    """Flash-style banded attention for one (batch, head, q-tile, kv-step)."""
    qi = pl.program_id(2)
    ki = pl.program_id(3)

    @pl.when(ki == 0)
    def _init():
        m_sc[...] = jnp.full_like(m_sc, -jnp.inf)
        l_sc[...] = jnp.zeros_like(l_sc)
        acc_sc[...] = jnp.zeros_like(acc_sc)

    # First kv tile touched by this query tile (same formula as the index_map,
    # but WITHOUT the upper clamp so clamp-duplicates can be skipped).
    kv_blk = jnp.maximum(qi * tq - half_w, 0) // tk + ki

    @pl.when(kv_blk < n_kv)
    def _step():
        q = q_ref[0, 0]                                             # (TQ, hd) bf16
        k = k_ref[0, 0]                                             # (TK, hd) bf16
        s = jax.lax.dot_general(q, k, (((1,), (1,)), ((), ())),
                                preferred_element_type=jnp.float32)  # (TQ, TK)
        # Band mask generated in-kernel (no (T,T) HBM mask).
        q_pos = qi * tq + jax.lax.broadcasted_iota(jnp.int32, (tq, tk), 0)
        k_pos = kv_blk * tk + jax.lax.broadcasted_iota(jnp.int32, (tq, tk), 1)
        in_band = (jnp.abs(q_pos - k_pos) <= half_w) & (k_pos < t_actual)
        s = jnp.where(in_band, s, NEG_INF)

        m_prev = m_sc[...]
        m_new = jnp.maximum(m_prev, jnp.max(s, axis=-1, keepdims=True))
        alpha = jnp.exp(m_prev - m_new)
        p = jnp.exp(s - m_new)
        l_sc[...] = alpha * l_sc[...] + jnp.sum(p, axis=-1, keepdims=True)
        acc_sc[...] = alpha * acc_sc[...] + jnp.dot(
            p.astype(v_ref.dtype), v_ref[0, 0],
            preferred_element_type=jnp.float32)
        m_sc[...] = m_new

    @pl.when(ki == pl.num_programs(3) - 1)
    def _finalize():
        inv_l = pl.reciprocal(l_sc[...], approx=True)
        o_ref[0, 0] = (acc_sc[...] * inv_l).astype(o_ref.dtype)


def post_attn_kernel(x_ref, ctx_ref, wo_ref, bo_ref, ln1g_ref, ln1b_ref,
                     w1_ref, b1_ref, w2_ref, b2_ref, ln2g_ref, ln2b_ref,
                     out_ref):
    f32 = jnp.float32
    x = x_ref[0]                                                    # (TQ, D) f32
    attn = jnp.dot(ctx_ref[0], wo_ref[...],
                   preferred_element_type=f32) + bo_ref[...]
    y = _layer_norm(x + attn, ln1g_ref[...], ln1b_ref[...])
    h = jnp.dot(y.astype(jnp.bfloat16), w1_ref[...],
                preferred_element_type=f32) + b1_ref[...]
    # TODO(synk): HF "gelu" is the exact erf-based GELU; tanh approximation
    # kept because erf may not lower in Mosaic.
    h = jax.nn.gelu(h, approximate=True)
    z = jnp.dot(h.astype(jnp.bfloat16), w2_ref[...],
                preferred_element_type=f32) + b2_ref[...]
    out_ref[0] = _layer_norm(y + z, ln2g_ref[...], ln2b_ref[...])


# ---------------------------- pallas wrappers --------------------------------


def _const_spec(shape):
    nd = len(shape)
    return pl.BlockSpec(shape, lambda *_: (0,) * nd)


def _cparams(sem):
    return pltpu.CompilerParams(dimension_semantics=sem,
                                vmem_limit_bytes=VMEM_LIMIT)


def embed(x, pos, tok, g, b, *, tq):
    B, T, D = x.shape
    return pl.pallas_call(
        embed_kernel,
        out_shape=jax.ShapeDtypeStruct((B, T, D), jnp.float32),
        grid=(B, T // tq),
        in_specs=[pl.BlockSpec((1, tq, D), lambda bi, qi: (bi, qi, 0)),
                  pl.BlockSpec((tq, D), lambda bi, qi: (qi, 0)),
                  _const_spec((1, D)), _const_spec((1, D)), _const_spec((1, D))],
        out_specs=pl.BlockSpec((1, tq, D), lambda bi, qi: (bi, qi, 0)),
        compiler_params=_cparams(("parallel", "parallel")),
    )(x, pos, tok, g, b)


def qkv_proj(x, w_qkv, b_qkv, *, tq):
    B, T, D = x.shape
    D3 = w_qkv.shape[1]
    # TODO(synk): single-buffer the constant-index weight block
    # (pipeline_mode=pl.Buffered(1) or manual copy) to halve weight VMEM.
    return pl.pallas_call(
        qkv_kernel,
        out_shape=jax.ShapeDtypeStruct((B, T, D3), jnp.bfloat16),
        grid=(B, T // tq),
        in_specs=[pl.BlockSpec((1, tq, D), lambda bi, qi: (bi, qi, 0)),
                  _const_spec((D, D3)), _const_spec((1, D3))],
        out_specs=pl.BlockSpec((1, tq, D3), lambda bi, qi: (bi, qi, 0)),
        compiler_params=_cparams(("parallel", "parallel")),
    )(x, w_qkv, b_qkv)


def banded_attention(q, k, v, *, half_w, t_actual, tq, tk):
    B, H, T, hd = q.shape
    n_q = T // tq
    n_kv = T // tk
    # kv tiles that can intersect one query tile's window (static bound).
    n_kv_steps = min(n_kv, (tq + 2 * half_w + tk - 1) // tk + 1)

    def q_map(bi, hi, qi, ki):
        return (bi, hi, qi, 0)

    def kv_map(bi, hi, qi, ki):
        base = jnp.maximum(qi * tq - half_w, 0) // tk
        return (bi, hi, jnp.minimum(base + ki, n_kv - 1), 0)

    kern = functools.partial(attn_kernel, tq, tk, half_w, n_kv, t_actual)
    return pl.pallas_call(
        kern,
        out_shape=jax.ShapeDtypeStruct((B, H, T, hd), jnp.bfloat16),
        grid=(B, H, n_q, n_kv_steps),
        in_specs=[pl.BlockSpec((1, 1, tq, hd), q_map),
                  pl.BlockSpec((1, 1, tk, hd), kv_map),
                  pl.BlockSpec((1, 1, tk, hd), kv_map)],
        out_specs=pl.BlockSpec((1, 1, tq, hd), q_map),
        scratch_shapes=[pltpu.VMEM((tq, 1), jnp.float32),   # running max
                        pltpu.VMEM((tq, 1), jnp.float32),   # running sum
                        pltpu.VMEM((tq, hd), jnp.float32)], # context acc
        compiler_params=_cparams(("parallel", "parallel", "parallel",
                                  "arbitrary")),
    )(q, k, v)


def post_attention_ffn(x, ctx, p, *, tq):
    B, T, D = x.shape
    F = p["w1"].shape[1]
    # TODO(synk): for v7x (64 MiB VMEM) tile the FFN intermediate dim F
    # (w1 by column blocks / w2 by row blocks with a pl.when-finalized
    # accumulator) and single-buffer the constant weight blocks.
    return pl.pallas_call(
        post_attn_kernel,
        out_shape=jax.ShapeDtypeStruct((B, T, D), jnp.float32),
        grid=(B, T // tq),
        in_specs=[pl.BlockSpec((1, tq, D), lambda bi, qi: (bi, qi, 0)),
                  pl.BlockSpec((1, tq, D), lambda bi, qi: (bi, qi, 0)),
                  _const_spec((D, D)), _const_spec((1, D)),   # wo, bo
                  _const_spec((1, D)), _const_spec((1, D)),   # ln1 g/b
                  _const_spec((D, F)), _const_spec((1, F)),   # w1, b1
                  _const_spec((F, D)), _const_spec((1, D)),   # w2, b2
                  _const_spec((1, D)), _const_spec((1, D))],  # ln2 g/b
        out_specs=pl.BlockSpec((1, tq, D), lambda bi, qi: (bi, qi, 0)),
        compiler_params=_cparams(("parallel", "parallel")),
    )(x, ctx, p["wo"], p["bo"], p["ln1_g"], p["ln1_b"],
      p["w1"], p["b1"], p["w2"], p["b2"], p["ln2_g"], p["ln2_b"])


# ------------------------------- model ---------------------------------------


def longformer_layer(x, p, *, n_head, head_dim, half_w, t_actual, tq, tk):
    B, T, D = x.shape
    qkv = qkv_proj(x, p["w_qkv"], p["b_qkv"], tq=tq)              # (B,T,3D) bf16
    # Wrapper-side layout plumbing: present head-major (B,H,T,hd) slabs to the
    # attention kernel so the head axis is a grid axis (no lane-slicing).
    qkv = qkv.reshape(B, T, 3, n_head, head_dim)
    qkv = jnp.transpose(qkv, (2, 0, 3, 1, 4))                     # (3,B,H,T,hd)
    ctx = banded_attention(qkv[0], qkv[1], qkv[2],
                           half_w=half_w, t_actual=t_actual, tq=tq, tk=tk)
    ctx = jnp.transpose(ctx, (0, 2, 1, 3)).reshape(B, T, D)       # (B,T,D) bf16
    return post_attention_ffn(x, ctx, p, tq=tq)


def longformer_encoder(feat, feat_len, params, config):
    """feat: [T, B, D] (time-major, as fed to the PyTorch module)."""
    x = jnp.transpose(feat, (1, 0, 2)).astype(jnp.float32)        # (B, T, D)
    B, T, D = x.shape
    n_head = config["n_head"]
    head_dim = D // n_head
    half_w = config["attention_window"] // 2

    tq = 128 if T >= 128 else T                                   # query/key tile
    t_pad = -(-T // tq) * tq
    if t_pad != T:
        x = jnp.pad(x, ((0, 0), (0, t_pad - T), (0, 0)))

    # Longformer position ids start at padding_idx + 1 = 2 for inputs_embeds.
    pos = params["pos_emb"][2:2 + T]
    if t_pad != T:
        pos = jnp.pad(pos, ((0, t_pad - T), (0, 0)))

    x = embed(x, pos, params["tok_emb"],
              params["emb_ln_g"], params["emb_ln_b"], tq=tq)

    # NOTE: the PyTorch module calls the encoder without attention_mask, so
    # feat_len is not used for masking there either.  Padded frames beyond T
    # (tile padding) are masked as attention keys via t_actual.
    for lp in params["layers"]:
        x = longformer_layer(x, lp, n_head=n_head, head_dim=head_dim,
                             half_w=half_w, t_actual=T, tq=tq, tk=tq)

    x = x[:, :T]
    return jnp.transpose(x, (1, 0, 2)), feat_len                  # [T, B, D]


# ------------------------------- params --------------------------------------


def init_params(key, *, hid_dim, n_layers, ffn_dim, max_pos, n_head):
    std = 0.02
    head_dim = hid_dim // n_head
    scale = 1.0 / math.sqrt(head_dim)                 # Longformer Q scale
    keys = jax.random.split(key, 2 + n_layers)
    params = {
        "pos_emb": std * jax.random.normal(keys[0], (max_pos, hid_dim), jnp.float32),
        "tok_emb": std * jax.random.normal(keys[1], (1, hid_dim), jnp.float32),
        "emb_ln_g": jnp.ones((1, hid_dim), jnp.float32),
        "emb_ln_b": jnp.zeros((1, hid_dim), jnp.float32),
        "layers": [],
    }
    for l in range(n_layers):
        ks = jax.random.split(keys[2 + l], 6)
        wq = std * jax.random.normal(ks[0], (hid_dim, hid_dim), jnp.float32)
        wk = std * jax.random.normal(ks[1], (hid_dim, hid_dim), jnp.float32)
        wv = std * jax.random.normal(ks[2], (hid_dim, hid_dim), jnp.float32)
        bq = jnp.zeros((1, hid_dim), jnp.float32)
        bk = jnp.zeros((1, hid_dim), jnp.float32)
        bv = jnp.zeros((1, hid_dim), jnp.float32)
        params["layers"].append({
            # Fused Q|K|V weight (Q pre-scaled by 1/sqrt(head_dim)), bf16 for MXU.
            "w_qkv": jnp.concatenate([wq * scale, wk, wv], axis=1).astype(jnp.bfloat16),
            "b_qkv": jnp.concatenate([bq * scale, bk, bv], axis=1),       # f32 (1,3D)
            "wo": (std * jax.random.normal(ks[3], (hid_dim, hid_dim),
                                           jnp.float32)).astype(jnp.bfloat16),
            "bo": jnp.zeros((1, hid_dim), jnp.float32),
            "ln1_g": jnp.ones((1, hid_dim), jnp.float32),
            "ln1_b": jnp.zeros((1, hid_dim), jnp.float32),
            "w1": (std * jax.random.normal(ks[4], (hid_dim, ffn_dim),
                                           jnp.float32)).astype(jnp.bfloat16),
            "b1": jnp.zeros((1, ffn_dim), jnp.float32),
            "w2": (std * jax.random.normal(ks[5], (ffn_dim, hid_dim),
                                           jnp.float32)).astype(jnp.bfloat16),
            "b2": jnp.zeros((1, hid_dim), jnp.float32),
            "ln2_g": jnp.ones((1, hid_dim), jnp.float32),
            "ln2_b": jnp.zeros((1, hid_dim), jnp.float32),
        })
    return params


# --------------------------------- main ---------------------------------------

if __name__ == "__main__":
    # Small config consistent with LongformerEncoder(in_dim, hid_dim, n_layers):
    # inputs_embeds path requires in_dim == hidden_size.
    B, T = 2, 8
    in_dim = hid_dim = 32
    n_layers = 2
    n_head = 8
    ffn_dim = 128                # small stand-in for intermediate_size
    config = {"n_head": n_head, "attention_window": 512}

    key = jax.random.PRNGKey(0)
    k_param, k_feat = jax.random.split(key)
    params = init_params(k_param, hid_dim=hid_dim, n_layers=n_layers,
                         ffn_dim=ffn_dim, max_pos=T + 2, n_head=n_head)

    feat = jax.random.normal(k_feat, (T, B, in_dim), dtype=jnp.float32)  # [T,B,D]
    feat_len = jnp.full((B,), T, dtype=jnp.int32)

    out, out_len = longformer_encoder(feat, feat_len, params, config)
    jax.block_until_ready((out, out_len))

    assert out.shape == (T, B, hid_dim), out.shape
    assert out_len.shape == (B,)
    assert bool(jnp.all(jnp.isfinite(out)))
    print("KERNEL_OK")
</pallas_src>

<mosaic_0001>
module attributes {stable_mosaic.version = 11 : i64} {
  func.func @embed_kernel(%arg0: i32, %arg1: i32, %arg2: memref<1x8x32xf32, #tpu.memory_space<vmem>>, %arg3: memref<8x32xf32, #tpu.memory_space<vmem>>, %arg4: memref<1x32xf32, #tpu.memory_space<vmem>>, %arg5: memref<1x32xf32, #tpu.memory_space<vmem>>, %arg6: memref<1x32xf32, #tpu.memory_space<vmem>>, %arg7: memref<1x8x32xf32, #tpu.memory_space<vmem>>) attributes {dimension_semantics = [#tpu.dimension_semantics<parallel>, #tpu.dimension_semantics<parallel>], iteration_bounds = array<i64: 2, 1>, scalar_prefetch = 0 : i64, scratch_operands = 0 : i64, tpu.core_type = #tpu.core_type<tc>, window_params = [{transform_indices = @transform_0, window_bounds = array<i64: 1, 8, 32>}, {transform_indices = @transform_1, window_bounds = array<i64: 8, 32>}, {pipeline_mode = #tpu.pipeline_mode<synchronous>, transform_indices = @transform_2, window_bounds = array<i64: 1, 32>}, {pipeline_mode = #tpu.pipeline_mode<synchronous>, transform_indices = @transform_3, window_bounds = array<i64: 1, 32>}, {pipeline_mode = #tpu.pipeline_mode<synchronous>, transform_indices = @transform_4, window_bounds = array<i64: 1, 32>}, {transform_indices = @transform_5, window_bounds = array<i64: 1, 8, 32>}]} {
    %c0 = arith.constant 0 : index
    %c0_0 = arith.constant 0 : index
    %c0_1 = arith.constant 0 : index
    %0 = vector.load %arg2[%c0, %c0_0, %c0_1] : memref<1x8x32xf32, #tpu.memory_space<vmem>>, vector<1x8x32xf32>
    %1 = vector.shape_cast %0 : vector<1x8x32xf32> to vector<8x32xf32>
    %c0_2 = arith.constant 0 : index
    %c0_3 = arith.constant 0 : index
    %2 = vector.load %arg3[%c0_2, %c0_3] : memref<8x32xf32, #tpu.memory_space<vmem>>, vector<8x32xf32>
    %3 = arith.addf %1, %2 : vector<8x32xf32>
    %c0_4 = arith.constant 0 : index
    %c0_5 = arith.constant 0 : index
    %4 = vector.load %arg4[%c0_4, %c0_5] : memref<1x32xf32, #tpu.memory_space<vmem>>, vector<1x32xf32>
    %5 = vector.broadcast %4 : vector<1x32xf32> to vector<8x32xf32>
    %6 = arith.addf %3, %5 : vector<8x32xf32>
    %c0_6 = arith.constant 0 : index
    %c0_7 = arith.constant 0 : index
    %7 = vector.load %arg5[%c0_6, %c0_7] : memref<1x32xf32, #tpu.memory_space<vmem>>, vector<1x32xf32>
    %c0_8 = arith.constant 0 : index
    %c0_9 = arith.constant 0 : index
    %8 = vector.load %arg6[%c0_8, %c0_9] : memref<1x32xf32, #tpu.memory_space<vmem>>, vector<1x32xf32>
    %cst = arith.constant dense<0.000000e+00> : vector<8xf32>
    %9 = vector.multi_reduction <add>, %6, %cst [1] : vector<8x32xf32> to vector<8xf32>
    %10 = vector.shape_cast %9 : vector<8xf32> to vector<8x1xf32>
    %cst_10 = arith.constant 3.200000e+01 : f32
    %11 = vector.broadcast %cst_10 : f32 to vector<8x1xf32>
    %12 = arith.divf %10, %11 : vector<8x1xf32>
    %13 = vector.broadcast %12 : vector<8x1xf32> to vector<8x32xf32>
    %14 = arith.subf %6, %13 : vector<8x32xf32>
    %15 = arith.mulf %14, %14 : vector<8x32xf32>
    %cst_11 = arith.constant dense<0.000000e+00> : vector<8xf32>
    %16 = vector.multi_reduction <add>, %15, %cst_11 [1] : vector<8x32xf32> to vector<8xf32>
    %17 = vector.shape_cast %16 : vector<8xf32> to vector<8x1xf32>
    %cst_12 = arith.constant 3.200000e+01 : f32
    %18 = vector.broadcast %cst_12 : f32 to vector<8x1xf32>
    %19 = arith.divf %17, %18 : vector<8x1xf32>
    %20 = vector.broadcast %12 : vector<8x1xf32> to vector<8x32xf32>
    %21 = arith.subf %6, %20 : vector<8x32xf32>
    %cst_13 = arith.constant 9.99999996E-13 : f32
    %22 = vector.broadcast %cst_13 : f32 to vector<8x1xf32>
    %23 = arith.addf %19, %22 : vector<8x1xf32>
    %24 = math.rsqrt %23 : vector<8x1xf32>
    %25 = vector.broadcast %24 : vector<8x1xf32> to vector<8x32xf32>
    %26 = arith.mulf %21, %25 : vector<8x32xf32>
    %27 = vector.broadcast %7 : vector<1x32xf32> to vector<8x32xf32>
    %28 = arith.mulf %26, %27 : vector<8x32xf32>
    %29 = vector.broadcast %8 : vector<1x32xf32> to vector<8x32xf32>
    %30 = arith.addf %28, %29 : vector<8x32xf32>
    %c0_14 = arith.constant 0 : index
    %c0_15 = arith.constant 0 : index
    %c0_16 = arith.constant 0 : index
    %31 = vector.load %arg7[%c0_14, %c0_15, %c0_16] : memref<1x8x32xf32, #tpu.memory_space<vmem>>, vector<1x8x32xf32>
    %32 = vector.shape_cast %31 : vector<1x8x32xf32> to vector<8x32xf32>
    %33 = vector.shape_cast %30 : vector<8x32xf32> to vector<1x8x32xf32>
    tpu.vector_store %arg7[%c0_14, %c0_15, %c0_16], %33 {strides = array<i32>} : memref<1x8x32xf32, #tpu.memory_space<vmem>>, vector<1x8x32xf32>,
    return
  }
  func.func @transform_0(%arg0: i32, %arg1: i32) -> (i32, i32, i32) {
    %c0_i32 = arith.constant 0 : i32
    %c0_i32_0 = arith.constant 0 : i32
    return %arg0, %arg1, %c0_i32 : i32, i32, i32
  }
  func.func @transform_1(%arg0: i32, %arg1: i32) -> (i32, i32) {
    %c0_i32 = arith.constant 0 : i32
    %c0_i32_0 = arith.constant 0 : i32
    return %arg1, %c0_i32 : i32, i32
  }
  func.func @transform_2(%arg0: i32, %arg1: i32) -> (i32, i32) {
    %c0_i32 = arith.constant 0 : i32
    %c0_i32_0 = arith.constant 0 : i32
    %c0_i32_1 = arith.constant 0 : i32
    return %c0_i32, %c0_i32_0 : i32, i32
  }
  func.func @transform_3(%arg0: i32, %arg1: i32) -> (i32, i32) {
    %c0_i32 = arith.constant 0 : i32
    %c0_i32_0 = arith.constant 0 : i32
    %c0_i32_1 = arith.constant 0 : i32
    return %c0_i32, %c0_i32_0 : i32, i32
  }
  func.func @transform_4(%arg0: i32, %arg1: i32) -> (i32, i32) {
    %c0_i32 = arith.constant 0 : i32
    %c0_i32_0 = arith.constant 0 : i32
    %c0_i32_1 = arith.constant 0 : i32
    return %c0_i32, %c0_i32_0 : i32, i32
  }
  func.func @transform_5(%arg0: i32, %arg1: i32) -> (i32, i32, i32) {
    %c0_i32 = arith.constant 0 : i32
    %c0_i32_0 = arith.constant 0 : i32
    return %arg0, %arg1, %c0_i32 : i32, i32, i32
  }
}

</mosaic_0001>

<llo_original>
// kernel: tpu_custom_call.1
$region0: #{tpu_custom_call.1}
  #allocation0 [shape = 'u32[]', space=smem, size = 0x4, offset = 0x4, fixed_abs, tag = 'smem constant byte address 0x4 - core index']
  #allocation1 [shape = 'u32[144,128]{1,0:T(1,128)}', space=vmem, size = 0x12000, scoped, tag = 'internal scratch']
  %s0 = inlined_call_operand.hbm [shape: f32[2,8,32], index: 0, kind: input, shape index: {}]
  %s1 = inlined_call_operand.hbm [shape: f32[8,32], index: 1, kind: input, shape index: {}]
  %s2 = inlined_call_operand.vmem [shape: f32[1,32], index: 2, kind: input, shape index: {}]
  %s3 = inlined_call_operand.vmem [shape: f32[1,32], index: 3, kind: input, shape index: {}]
  %s4 = inlined_call_operand.vmem [shape: f32[1,32], index: 4, kind: input, shape index: {}]
  %s5 = inlined_call_operand.hbm [shape: f32[2,8,32], index: 5, kind: output, shape index: {}]
  %s6 = sld [smem:[#allocation0]]
  $region61: #{tpu_custom_call.1} parent=0
    _
  %s8 = ssub.s32 1, %s6
  %s9 = scalar_select 0, %s8, %s6
  $region1: #{tpu_custom_call.1} parent=0
    #allocation2 [shape = 'u8[8192]{0}', space=vmem, size = 0x2000, scoped, tag = 'input window, operand 0']
    #allocation3 [shape = 's32[2]{0}', space=sflag, size = 0x8, scoped, tag = 'scoped memory for tpu_custom_call.1']
    #allocation4 [shape = 's32[2]{0}', space=sflag, size = 0x8, scoped, tag = 'scoped memory for tpu_custom_call.1']
    #allocation5 [shape = 'u8[4096]{0}', space=vmem, size = 0x1000, scoped, tag = 'input window, operand 1, single buffered']
    #allocation6 [shape = 's32[1]{0}', space=sflag, size = 0x4, scoped, tag = 'scoped memory for tpu_custom_call.1']
    #allocation7 [shape = 'u8[8192]{0}', space=vmem, size = 0x2000, scoped, tag = 'output window, operand 0']
    %10 = vsyncpa [#allocation3], 0
    %s11 = scalar_lea.sflag [#allocation3], 1
    %12 = vsyncpa %s11, 0
    %13 = vsyncpa [#allocation6], 0
    %14 = vsyncpa [#allocation4], 0
    %s15 = scalar_lea.sflag [#allocation4], 1
    %16 = vsyncpa %s15, 0
    loop: start=0, step=1, limit=4
    $region2: #{tpu_custom_call.1} parent=1 // loop_pre_header
      _
    $region3: #{tpu_custom_call.1} parent=1 // loop_header
      %s18 = sphi 0, %s22
      %p19 = scmp.ge.s32.totalorder %s18, 4
      %s25 = sphi 0, %s37
      %s26 = sphi 0, %s33
      %s27 = sphi 0, %s25
      %s28 = sphi 0, %s26
      %s29 = sphi 0, %s27
      %s30 = sphi 0, %s28
      %s42 = sphi 0, %s44
      %s45 = sphi 0, %s42
      %s46 = sphi 0, %s45
      %s62 = sphi 0, %s46
      %s68 = sphi 0, %s70
      %s71 = sphi 0, %s68
      %s72 = sphi 0, %s71
      %s88 = sphi 0, %s72
      %s92 = sphi 0, %s92
      %s94 = sphi 0, %s92
      %s95 = sphi 0, %s94
      %s109 = sphi 0, %s95
      %s113 = sphi 0, %s113
      %s115 = sphi 0, %s113
      %s116 = sphi 0, %s115
      %s130 = sphi 0, %s116
      %s134 = sphi 0, %s134
      %s136 = sphi 0, %s134
      %s137 = sphi 0, %s136
      %s151 = sphi 0, %s137
      %s159 = sphi 0, %s161
      %s162 = sphi 0, %s159
      %s163 = sphi 0, %s162
      %s179 = sphi 0, %s163
    $region4: #{tpu_custom_call.1} parent=1 // loop_header_branch
      %21 = sbr.rel (%p19) target = $region8
    $region5: #{tpu_custom_call.1} parent=1 // loop_body
      %s23 = ssub.s32 %s18, 1
      %s24 = ssub.s32 %s18, 2
      %s31 = sadd.s32 1, %s26
      %p32 = scmp.ge.s32.totalorder %s31, 1
      %s33 = scalar_select %p32, 0, %s31
      %s34 = sadd.s32 1, %s25
      %s35 = scalar_select %p32, %s34, %s25
      %p36 = scmp.ge.s32.totalorder %s35, 2
      %s37 = scalar_select %p36, 0, %s35
      %s38 = ssub.s32 %s25, %s37
      %s39 = ssub.s32 %s26, %s33
      %s40 = sor.u32 %s38, %s39
      %p41 = scmp.eq.s32.totalorder %s40, 0
      %s43 = sadd.s32 %s42, 1
      %s44 = scalar_select %p41, %s42, %s43
      %p47 = pneg %p41
      %p48 = scmp.eq.s32.totalorder %s18, 1
      %p49 = por %p47, %p48
      %p50 = scmp.ne.s32.totalorder %s42, %s45
      %p51 = scmp.eq.s32.totalorder %s18, 0
      %p52 = por %p50, %p51
      %p53 = scmp.ne.s32.totalorder %s42, %s45
      %p54 = scmp.eq.s32.totalorder %s23, 1
      %p55 = por %p53, %p54
      %p56 = scmp.ne.s32.totalorder %s45, %s46
      %p57 = scmp.eq.s32.totalorder %s23, 0
      %p58 = por %p56, %p57
      %p59 = scmp.ne.s32.totalorder %s45, %s46
      %p60 = scmp.eq.s32.totalorder %s24, 1
      %p61 = por %p59, %p60
      %p63 = scmp.ne.s32.totalorder %s46, %s62
      %p64 = scmp.eq.s32.totalorder %s24, 0
      %p65 = por %p63, %p64
      %s66 = ssub.s32 %s26, %s33
      %p67 = scmp.eq.s32.totalorder %s66, 0
      %s69 = sadd.s32 %s68, 1
      %s70 = scalar_select %p67, %s68, %s69
      %p73 = pneg %p67
      %p74 = scmp.eq.s32.totalorder %s18, 1
      %p75 = por %p73, %p74
      %p76 = scmp.ne.s32.totalorder %s68, %s71
      %p77 = scmp.eq.s32.totalorder %s18, 0
      %p78 = por %p76, %p77
      %p79 = scmp.ne.s32.totalorder %s68, %s71
      %p80 = scmp.eq.s32.totalorder %s23, 1
      %p81 = por %p79, %p80
      %p82 = scmp.ne.s32.totalorder %s71, %s72
      %p83 = scmp.eq.s32.totalorder %s23, 0
      %p84 = por %p82, %p83
      %p85 = scmp.ne.s32.totalorder %s71, %s72
      %p86 = scmp.eq.s32.totalorder %s24, 1
      %p87 = por %p85, %p86
      %p89 = scmp.ne.s32.totalorder %s72, %s88
      %p90 = scmp.eq.s32.totalorder %s24, 0
      %p91 = por %p89, %p90
      %s93 = sadd.s32 %s92, 1
      %p96 = scmp.eq.s32.totalorder %s18, 1
      %p97 = scmp.ne.s32.totalorder %s92, %s94
      %p98 = scmp.eq.s32.totalorder %s18, 0
      %p99 = por %p97, %p98
      %p100 = scmp.ne.s32.totalorder %s92, %s94
      %p101 = scmp.eq.s32.totalorder %s23, 1
      %p102 = por %p100, %p101
      %p103 = scmp.ne.s32.totalorder %s94, %s95
      %p104 = scmp.eq.s32.totalorder %s23, 0
      %p105 = por %p103, %p104
      %p106 = scmp.ne.s32.totalorder %s94, %s95
      %p107 = scmp.eq.s32.totalorder %s24, 1
      %p108 = por %p106, %p107
      %p110 = scmp.ne.s32.totalorder %s95, %s109
      %p111 = scmp.eq.s32.totalorder %s24, 0
      %p112 = por %p110, %p111
      %s114 = sadd.s32 %s113, 1
      %p117 = scmp.eq.s32.totalorder %s18, 1
      %p118 = scmp.ne.s32.totalorder %s113, %s115
      %p119 = scmp.eq.s32.totalorder %s18, 0
      %p120 = por %p118, %p119
      %p121 = scmp.ne.s32.totalorder %s113, %s115
      %p122 = scmp.eq.s32.totalorder %s23, 1
      %p123 = por %p121, %p122
      %p124 = scmp.ne.s32.totalorder %s115, %s116
      %p125 = scmp.eq.s32.totalorder %s23, 0
      %p126 = por %p124, %p125
      %p127 = scmp.ne.s32.totalorder %s115, %s116
      %p128 = scmp.eq.s32.totalorder %s24, 1
      %p129 = por %p127, %p128
      %p131 = scmp.ne.s32.totalorder %s116, %s130
      %p132 = scmp.eq.s32.totalorder %s24, 0
      %p133 = por %p131, %p132
      %s135 = sadd.s32 %s134, 1
      %p138 = scmp.eq.s32.totalorder %s18, 1
      %p139 = scmp.ne.s32.totalorder %s134, %s136
      %p140 = scmp.eq.s32.totalorder %s18, 0
      %p141 = por %p139, %p140
      %p142 = scmp.ne.s32.totalorder %s134, %s136
      %p143 = scmp.eq.s32.totalorder %s23, 1
      %p144 = por %p142, %p143
      %p145 = scmp.ne.s32.totalorder %s136, %s137
      %p146 = scmp.eq.s32.totalorder %s23, 0
      %p147 = por %p145, %p146
      %p148 = scmp.ne.s32.totalorder %s136, %s137
      %p149 = scmp.eq.s32.totalorder %s24, 1
      %p150 = por %p148, %p149
      %p152 = scmp.ne.s32.totalorder %s137, %s151
      %p153 = scmp.eq.s32.totalorder %s24, 0
      %p154 = por %p152, %p153
      %s155 = ssub.s32 %s25, %s37
      %s156 = ssub.s32 %s26, %s33
      %s157 = sor.u32 %s155, %s156
      %p158 = scmp.eq.s32.totalorder %s157, 0
      %s160 = sadd.s32 %s159, 1
      %s161 = scalar_select %p158, %s159, %s160
      %p164 = pneg %p158
      %p165 = scmp.eq.s32.totalorder %s18, 1
      %p166 = por %p164, %p165
      %p167 = scmp.ne.s32.totalorder %s159, %s162
      %p168 = scmp.eq.s32.totalorder %s18, 0
      %p169 = por %p167, %p168
      %p170 = scmp.ne.s32.totalorder %s159, %s162
      %p171 = scmp.eq.s32.totalorder %s23, 1
      %p172 = por %p170, %p171
      %p173 = scmp.ne.s32.totalorder %s162, %s163
      %p174 = scmp.eq.s32.totalorder %s23, 0
      %p175 = por %p173, %p174
      %p176 = scmp.ne.s32.totalorder %s162, %s163
      %p177 = scmp.eq.s32.totalorder %s24, 1
      %p178 = por %p176, %p177
      %p180 = scmp.ne.s32.totalorder %s163, %s179
      %p181 = scmp.eq.s32.totalorder %s24, 0
      %p182 = por %p180, %p181
      %p183 = scmp.le.s32.totalorder 1, %s18
      %p184 = scmp.lt.s32.totalorder %s18, 3
      %p185 = pnand %p183, %p184
      %p186 = pneg %p185
      // Predicated region
      $region9: #{tpu_custom_call.1} parent=5 // pred_check
        _
      $region10: #{tpu_custom_call.1} parent=5 // pred_check_branch
        %188 = sbr.rel (%p185) target = $region12
      $region11: #{tpu_custom_call.1} parent=5 // pred_region
        %s189 = ssub.s32 %s18, 1
        // Predicated region
        $region13: #{tpu_custom_call.1} parent=11 // pred_check
          %p190 = pneg %p84
        $region14: #{tpu_custom_call.1} parent=11 // pred_check_branch
          %192 = sbr.rel (%p190) target = $region16
        $region15: #{tpu_custom_call.1} parent=11 // pred_region
          %s194 = ssub.s32 128, 128
          %195 = vsyncadd [#allocation6], %s194
          %s196 = smul.addr %s28, 128
          %s197 = scalar_lea.hbm %s1, %s196
          %s199 = sshll.u32 [#allocation5], 4
          %s200 = int_to_ptr.vmem [resolvable:$true] %s199
          %202 = dma.hbm_to_vmem [thread:$0]  %s197, 128, %s200, [#allocation6]
        $region16: #{tpu_custom_call.1} parent=11 // pred_fallthru
          _
        // Predicated region
        $region17: #{tpu_custom_call.1} parent=11 // pred_check
          %p203 = pneg %p105
        $region18: #{tpu_custom_call.1} parent=11 // pred_check_branch
          %205 = sbr.rel (%p203) target = $region20
        $region19: #{tpu_custom_call.1} parent=11 // pred_region
          _
        $region20: #{tpu_custom_call.1} parent=11 // pred_fallthru
          _
        // Predicated region
        $region21: #{tpu_custom_call.1} parent=11 // pred_check
          %p206 = pneg %p126
        $region22: #{tpu_custom_call.1} parent=11 // pred_check_branch
          %208 = sbr.rel (%p206) target = $region24
        $region23: #{tpu_custom_call.1} parent=11 // pred_region
          _
        $region24: #{tpu_custom_call.1} parent=11 // pred_fallthru
          _
        // Predicated region
        $region25: #{tpu_custom_call.1} parent=11 // pred_check
          %p209 = pneg %p147
        $region26: #{tpu_custom_call.1} parent=11 // pred_check_branch
          %211 = sbr.rel (%p209) target = $region28
        $region27: #{tpu_custom_call.1} parent=11 // pred_region
          _
        $region28: #{tpu_custom_call.1} parent=11 // pred_fallthru
          _
      $region12: #{tpu_custom_call.1} parent=5 // pred_fallthru
        _
      %p212 = scmp.lt.s32.totalorder %s18, 2
      // Predicated region
      $region29: #{tpu_custom_call.1} parent=5 // pred_check
        %p213 = pneg %p212
      $region30: #{tpu_custom_call.1} parent=5 // pred_check_branch
        %215 = sbr.rel (%p213) target = $region32
      $region31: #{tpu_custom_call.1} parent=5 // pred_region
        // Predicated region
        $region33: #{tpu_custom_call.1} parent=31 // pred_check
          %p216 = pneg %p52
        $region34: #{tpu_custom_call.1} parent=31 // pred_check_branch
          %218 = sbr.rel (%p216) target = $region36
        $region35: #{tpu_custom_call.1} parent=31 // pred_region
          %s219 = sand.u32 %s42, 1
          %s220 = scalar_lea.sflag [#allocation3], %s219
          %s221 = sand.u32 %s42, 1
          %s222 = smul.addr %s221, 8
          %s223 = scalar_lea.vmem [#allocation2], %s222
          %s225 = ssub.s32 128, 128
          %226 = vsyncadd %s220, %s225
          %s227 = sadd.s32 %s26, %s25
          %s228 = smul.addr %s227, 128
          %s229 = scalar_lea.hbm %s0, %s228
          %s231 = sshll.u32 %s223, 4
          %s232 = int_to_ptr.vmem [resolvable:$true] %s231
          %234 = dma.hbm_to_vmem [thread:$0]  %s229, 128, %s232, %s220
        $region36: #{tpu_custom_call.1} parent=31 // pred_fallthru
          _
      $region32: #{tpu_custom_call.1} parent=5 // pred_fallthru
        _
      %p235 = scmp.le.s32.totalorder 1, %s18
      %p236 = scmp.lt.s32.totalorder %s18, 3
      %p237 = pnand %p235, %p236
      %p238 = pneg %p237
      // Predicated region
      $region37: #{tpu_custom_call.1} parent=5 // pred_check
        _
      $region38: #{tpu_custom_call.1} parent=5 // pred_check_branch
        %240 = sbr.rel (%p237) target = $region40
      $region39: #{tpu_custom_call.1} parent=5 // pred_region
        %s241 = ssub.s32 %s18, 1
        %s242 = sand.u32 %s45, 1
        %s243 = scalar_lea.sflag [#allocation3], %s242
        %s244 = sand.u32 %s45, 1
        %s245 = smul.addr %s244, 8
        %s246 = scalar_lea.vmem [#allocation2], %s245
        // Predicated region
        $region41: #{tpu_custom_call.1} parent=39 // pred_check
          %p247 = pneg %p58
        $region42: #{tpu_custom_call.1} parent=39 // pred_check_branch
          %249 = sbr.rel (%p247) target = $region44
        $region43: #{tpu_custom_call.1} parent=39 // pred_region
          %250 = dma.done %s243, 128
        $region44: #{tpu_custom_call.1} parent=39 // pred_fallthru
          _
        // Predicated region
        $region45: #{tpu_custom_call.1} parent=39 // pred_check
          %p251 = pneg %p84
        $region46: #{tpu_custom_call.1} parent=39 // pred_check_branch
          %253 = sbr.rel (%p251) target = $region48
        $region47: #{tpu_custom_call.1} parent=39 // pred_region
          %254 = dma.done [#allocation6], 128
        $region48: #{tpu_custom_call.1} parent=39 // pred_fallthru
          _
        %s255 = sand.u32 %s45, 1
        %s256 = scalar_lea.sflag [#allocation3], %s255
        %s257 = sand.u32 %s45, 1
        %s258 = smul.addr %s257, 8
        %s259 = scalar_lea.vmem [#allocation2], %s258
        %p260 = pneg %p58
        %p261 = pneg %p55
        %p262 = pneg %p84
        %p263 = pneg %p81
        %p264 = pneg %p105
        %p265 = pneg %p102
        %p266 = pneg %p126
        %p267 = pneg %p123
        %p268 = pneg %p147
        %p269 = pneg %p144
        %p270 = pneg %p175
        %p271 = pneg %p172
        %s272 = sand.u32 %s162, 1
        %s273 = scalar_lea.sflag [#allocation4], %s272
        %s274 = sand.u32 %s162, 1
        %s275 = smul.addr %s274, 8
        %s276 = scalar_lea.vmem [#allocation7], %s275
        %v277 = vld [vmem:[%s246] sm:$0xff]
        %v278 = vld [vmem:[#allocation5] sm:$0xff]
        %v279 = vadd.f32 %v277, %v278
        %v280 = vld [vmem:[%s2] sm:$0x1]
        %v282 = vlaneseq
        %v283 = vshrl.u32 %v282, 7
        %v284 = vsub.s32 0, %v283
        %v285 = vrot.slane %v280, %v284
        %v287 = vadd.f32 %v279, %v285
        %v288 = vld [vmem:[%s3] sm:$0x1]
        %v289 = vld [vmem:[%s4] sm:$0x1]
        %vm290 = vcmask 261120
        %v291 = vsel %vm290, %v287, 0.0
        %292 = vadd.xlane.f32.xlu0 %v291
        %v293 = vpop.xlane.xlu0 %292
        %v294 = vrcp.pop 32.0
        %v295 = vmul.f32 %v293, %v294
        %v296 = vsub.f32 %v287, %v295
        %v297 = vmul.f32 %v296, %v296
        %v298 = vsel %vm290, %v297, 0.0
        %299 = vadd.xlane.f32.xlu0 %v298
        %v300 = vpop.xlane.xlu0 %299
        %v301 = vmul.f32 %v300, %v294
        %v302 = vadd.f32 %v301, 1e-12
        %v303 = vrsqrt.pop %v302
        %v304 = vmul.f32 %v296, %v303
        %v306 = vlaneseq
        %v307 = vshrl.u32 %v306, 7
        %v308 = vsub.s32 0, %v307
        %v309 = vrot.slane %v288, %v308
        %v311 = vmul.f32 %v304, %v309
        %v313 = vlaneseq
        %v314 = vshrl.u32 %v313, 7
        %v315 = vsub.s32 0, %v314
        %v316 = vrot.slane %v289, %v315
        %v318 = vadd.f32 %v311, %v316
        %319 = vst.msk [vmem:[%s276] sm:$0xff] %vm290, %v318
        %s320 = sand.u32 %s162, 1
        %s321 = scalar_lea.sflag [#allocation4], %s320
        %s322 = sand.u32 %s162, 1
        %s323 = smul.addr %s322, 8
        %s324 = scalar_lea.vmem [#allocation7], %s323
        // Predicated region
        $region49: #{tpu_custom_call.1} parent=39 // pred_check
          %p325 = pneg %p172
        $region50: #{tpu_custom_call.1} parent=39 // pred_check_branch
          %327 = sbr.rel (%p325) target = $region52
        $region51: #{tpu_custom_call.1} parent=39 // pred_region
          %s329 = ssub.s32 128, 128
          %330 = vsyncadd %s321, %s329
          %s331 = sadd.s32 %s28, %s27
          %s332 = smul.addr %s331, 128
          %s333 = scalar_lea.hbm %s5, %s332
          %s335 = sshll.u32 %s324, 4
          %s336 = int_to_ptr.vmem [resolvable:$true] %s335
          %338 = dma.vmem_to_hbm [thread:$0]  %s336, 128, %s333, %s321
        $region52: #{tpu_custom_call.1} parent=39 // pred_fallthru
          _
      $region40: #{tpu_custom_call.1} parent=5 // pred_fallthru
        _
      %p339 = scmp.le.s32.totalorder 2, %s18
      // Predicated region
      $region53: #{tpu_custom_call.1} parent=5 // pred_check
        %p340 = pneg %p339
      $region54: #{tpu_custom_call.1} parent=5 // pred_check_branch
        %342 = sbr.rel (%p340) target = $region56
      $region55: #{tpu_custom_call.1} parent=5 // pred_region
        %s343 = ssub.s32 %s18, 2
        // Predicated region
        $region57: #{tpu_custom_call.1} parent=55 // pred_check
          %p344 = pneg %p178
        $region58: #{tpu_custom_call.1} parent=55 // pred_check_branch
          %346 = sbr.rel (%p344) target = $region60
        $region59: #{tpu_custom_call.1} parent=55 // pred_region
          %s347 = sand.u32 %s163, 1
          %s348 = scalar_lea.sflag [#allocation4], %s347
          %s349 = sand.u32 %s163, 1
          %s350 = smul.addr %s349, 8
          %s351 = scalar_lea.vmem [#allocation7], %s350
          %352 = dma.done %s348, 128
        $region60: #{tpu_custom_call.1} parent=55 // pred_fallthru
          _
      $region56: #{tpu_custom_call.1} parent=5 // pred_fallthru
        _
    $region6: #{tpu_custom_call.1} parent=1 // loop_footer
      %s22 = sadd.s32 1, %s18
    $region7: #{tpu_custom_call.1} parent=1 // loop_footer_branch
      %17 = sbr.rel target = $region3
    $region8: #{tpu_custom_call.1} parent=1 // loop_exit
      _
    %353 = vsyncpa [#allocation3], 1
    %s354 = scalar_lea.sflag [#allocation3], 1
    %355 = vsyncpa %s354, 1
    %356 = vsyncpa [#allocation6], 1
    %357 = vsyncpa [#allocation4], 1
    %s358 = scalar_lea.sflag [#allocation4], 1
    %359 = vsyncpa %s358, 1

</llo_original>
